<compile_context>
chip_gen: v5e
topology: v5e:2x2
jax: 0.10.0
libtpu: 0.0.40
codegen_flags: <defaults>
</compile_context>

<pallas_src>
import functools
import math

import jax
import jax.numpy as jnp
from jax import lax
from jax.experimental import pallas as pl
from jax.experimental.pallas import tpu as pltpu


_SUPPORTED_BORDERS = ("reflect", "replicate", "circular", "constant")
_ASSUMED_TENSORCORES = 2          # v7x worst case; extra grid steps are harmless on 1-TC chips
_INTERMEDIATE_F32_COPIES = 8      # budgeted in-kernel f32 temporaries per block element


# ----------------------------------------------------------------------------
# Parameter setup: taps as plain Python floats (become immediates in-kernel).
# ----------------------------------------------------------------------------
def get_gaussian_taps1d(kernel_size: int, sigma: float) -> tuple:
    """Matches kornia.get_gaussian_kernel1d (normalized 1D gaussian)."""
    half = kernel_size // 2
    xs = [float(i - half) for i in range(kernel_size)]
    if kernel_size % 2 == 0:  # kornia half-pixel offset for even sizes
        xs = [x + 0.5 for x in xs]
    g = [math.exp(-(x * x) / (2.0 * float(sigma) ** 2)) for x in xs]
    s = sum(g)
    return tuple(v / s for v in g)


def _border_index(c: int, n: int, border_type: str):
    """Map a (possibly out-of-range) padded coordinate to an in-range index.

    Returns None when the sample contributes zero (constant border)."""
    if 0 <= c < n:
        return c
    if border_type == "reflect":
        return -c if c < 0 else 2 * (n - 1) - c
    if border_type == "replicate":
        return 0 if c < 0 else n - 1
    if border_type == "circular":
        return c % n
    return None  # constant: zero padding


# ----------------------------------------------------------------------------
# Pallas kernel: separable depthwise conv over a batch of P (H, W) planes.
# ----------------------------------------------------------------------------
def _gaussian_blur_kernel(x_ref, o_ref, *, kx, ky, H, W, border_type, use_roll):
    # x_ref block: (P, H, W) native dtype; o_ref block: (P, H, W) out dtype.
    x = x_ref[...].astype(jnp.float32)   # in-register upcast, hidden under DMA
    px, py = len(kx) // 2, len(ky) // 2

    def cyc_shift(v, d, axis, size):
        # result[..., i, ...] = v[..., (i + d) % size, ...]
        amt = (-d) % size
        if amt == 0:
            return v
        if use_roll:
            return pltpu.roll(v, shift=amt, axis=axis)   # XLU slot (idle here)
        return jnp.roll(v, shift=amt, axis=axis)          # slice+concat fallback

    def fixup_value(src, out_idx, taps, rad, size, axis):
        """Exact (padded) filter value for one border row/column `out_idx`."""
        val = None
        for j, tap in enumerate(taps):
            c = _border_index(out_idx + j - rad, size, border_type)
            if c is None:
                continue
            piece = src[:, :, c:c + 1] if axis == 2 else src[:, c:c + 1, :]
            val = tap * piece if val is None else val + tap * piece
        if val is None:
            val = jnp.zeros_like(src[:, :, :1] if axis == 2 else src[:, :1, :])
        return val

    def border_positions(rad, size):
        return sorted(set(list(range(min(rad, size))) +
                          list(range(max(0, size - rad), size))))

    # ---- horizontal pass (W / lane axis). Gaussian taps are symmetric, so the
    # +d and -d shifts share one tap; this also makes the sum independent of
    # the roll sign convention. ----
    tmp = kx[px] * x
    for d in range(1, px + 1):
        tmp = tmp + kx[px + d] * (cyc_shift(x, d, 2, W) + cyc_shift(x, -d, 2, W))
    if px > 0 and border_type != "circular":   # rolls are already exact for circular
        lane = lax.broadcasted_iota(jnp.int32, x.shape, 2)
        for w in border_positions(px, W):
            tmp = jnp.where(lane == w, fixup_value(x, w, kx, px, W, axis=2), tmp)

    # ---- vertical pass (H / sublane axis) on the horizontally blurred tmp ----
    acc = ky[py] * tmp
    for d in range(1, py + 1):
        acc = acc + ky[py + d] * (cyc_shift(tmp, d, 1, H) + cyc_shift(tmp, -d, 1, H))
    if py > 0 and border_type != "circular":
        sub = lax.broadcasted_iota(jnp.int32, x.shape, 1)
        for r in border_positions(py, H):
            acc = jnp.where(sub == r, fixup_value(tmp, r, ky, py, H, axis=1), acc)

    if jnp.issubdtype(o_ref.dtype, jnp.integer):
        info = jnp.iinfo(o_ref.dtype)
        acc = jnp.clip(jnp.round(acc), float(info.min), float(info.max))
    o_ref[...] = acc.astype(o_ref.dtype)


# ----------------------------------------------------------------------------
# Wrapper (GaussianBlur2d.forward equivalent).
# ----------------------------------------------------------------------------
@functools.lru_cache(maxsize=None)
def _vmem_limit_bytes() -> int:
    """Generation-aware VMEM budget (leave headroom for Mosaic scratch)."""
    cap = 64 << 20  # conservative default == v7x per-TensorCore VMEM
    try:
        info = pltpu.get_tpu_info()
        for name in ("vmem_capacity_bytes", "vmem_bytes", "vmem_size_bytes"):
            v = getattr(info, name, None)
            if v:
                cap = int(v)
                break
    except Exception:
        pass
    # ~52 MiB on a 64 MiB v7x core, ~102 MiB on 128 MiB v5e/v6e.
    return max(32 << 20, min(cap - (12 << 20), int(cap * 0.8)))


def gaussian_blur2d(image: jnp.ndarray,
                    kernel_size=(3, 3),
                    sigma=(1.5, 1.5),
                    border_type: str = "reflect",
                    separable: bool = True) -> jnp.ndarray:
    B, C, H, W = image.shape
    ky_size, kx_size = int(kernel_size[0]), int(kernel_size[1])
    if ky_size < 1 or kx_size < 1 or ky_size % 2 == 0 or kx_size % 2 == 0:
        raise ValueError("kernel_size must be positive odd integers")
    if border_type not in _SUPPORTED_BORDERS:
        raise ValueError(f"unknown border_type {border_type!r}")
    px, py = kx_size // 2, ky_size // 2
    if border_type == "reflect" and (px > W - 1 or py > H - 1):
        raise ValueError("'reflect' border requires pad < spatial size")
    if border_type == "circular" and (px > W or py > H):
        raise ValueError("'circular' border requires pad <= spatial size")

    # NOTE: `separable` accepted for API parity; for a gaussian the 2D kernel is
    # the exact outer product of the 1D kernels, so both paths are identical.
    kx = get_gaussian_taps1d(kx_size, float(sigma[1]))
    ky = get_gaussian_taps1d(ky_size, float(sigma[0]))
    assert all(abs(kx[i] - kx[-1 - i]) < 1e-12 for i in range(kx_size))
    assert all(abs(ky[i] - ky[-1 - i]) < 1e-12 for i in range(ky_size))

    N = B * C
    planes = image.reshape(N, H, W)          # metadata-only reshape, native dtype

    # ---- block sizing from an explicit per-element VMEM budget ----
    vmem_limit = _vmem_limit_bytes()
    item = planes.dtype.itemsize
    per_elem = 2 * item + 2 * item + 4 * _INTERMEDIATE_F32_COPIES
    block_elems = max(1, vmem_limit // per_elem)
    p_bytes = max(1, block_elems // (H * W))

    # Keep >= 2*num_TC grid steps so ("parallel",) can shard across TensorCores
    # and the DMA pipeline has something to overlap with.
    min_steps = min(N, 2 * _ASSUMED_TENSORCORES)
    p_steps = max(1, N // min_steps)
    P = max(1, min(p_bytes, p_steps))
    num_steps = pl.cdiv(N, P)                # tail block (if any) is store-masked

    def build(use_roll: bool):
        kern = functools.partial(_gaussian_blur_kernel, kx=kx, ky=ky, H=H, W=W,
                                 border_type=border_type, use_roll=use_roll)
        return pl.pallas_call(
            kern,
            out_shape=jax.ShapeDtypeStruct((N, H, W), image.dtype),
            grid=(num_steps,),
            in_specs=[pl.BlockSpec((P, H, W), lambda i: (i, 0, 0))],
            out_specs=pl.BlockSpec((P, H, W), lambda i: (i, 0, 0)),
            compiler_params=pltpu.CompilerParams(
                dimension_semantics=("parallel",),
                vmem_limit_bytes=vmem_limit,
            ),
        )(planes)

    try:
        out = build(use_roll=True)
    except Exception:
        # Mosaic's rotate lowering support depends on the alignment of the
        # rolled axis / jax version; fall back to jnp.roll (slice+concat),
        # same math, same border fix-ups.
        out = build(use_roll=False)

    return out.reshape(B, C, H, W)


class GaussianBlur2d:
    """JAX/Pallas equivalent of torchkit GaussianBlur2d."""

    def __init__(self, kernel_size=(3, 3), sigma=(1.5, 1.5),
                 border_type: str = "reflect", separable: bool = True):
        self.kernel_size = kernel_size
        self.sigma = sigma
        self.border_type = border_type
        self.separable = separable

    def __call__(self, image: jnp.ndarray) -> jnp.ndarray:
        return gaussian_blur2d(image, self.kernel_size, self.sigma,
                               self.border_type, self.separable)


# ----------------------------------------------------------------------------
# Pure-JAX reference (correctness check only).
# ----------------------------------------------------------------------------
_BORDER_TO_JNP_PAD = {
    "reflect": "reflect",     # torch 'reflect' (edge not repeated) == numpy 'reflect'
    "replicate": "edge",
    "circular": "wrap",
    "constant": "constant",
}


def _reference_blur(image, kernel_size, sigma, border_type):
    B, C, H, W = image.shape
    ky_size, kx_size = int(kernel_size[0]), int(kernel_size[1])
    kx = jnp.asarray(get_gaussian_taps1d(kx_size, float(sigma[1])), jnp.float32)
    ky = jnp.asarray(get_gaussian_taps1d(ky_size, float(sigma[0])), jnp.float32)
    py, px = ky_size // 2, kx_size // 2
    planes = image.reshape(B * C, H, W).astype(jnp.float32)
    xpad = jnp.pad(planes, ((0, 0), (py, py), (px, px)),
                   mode=_BORDER_TO_JNP_PAD[border_type])
    tmp = sum(kx[j] * xpad[:, :, j:j + W] for j in range(kx_size))
    out = sum(ky[i] * tmp[:, i:i + H, :] for i in range(ky_size))
    return out.reshape(B, C, H, W).astype(image.dtype)


if __name__ == "__main__":
    key = jax.random.PRNGKey(0)
    configs = [
        # (shape NCHW,       kernel_size, sigma,      border_type)
        ((2, 4, 32, 128), (3, 3), (1.5, 1.5), "reflect"),    # lane-aligned W: roll fast path
        ((2, 4, 16, 16),  (5, 5), (2.0, 1.0), "replicate"),  # small W, 5-tap
        ((1, 3, 16, 16),  (3, 3), (1.5, 1.5), "circular"),   # rolls are exact, no fix-up
        ((3, 3, 16, 16),  (3, 3), (1.5, 1.5), "constant"),   # N=9 -> cdiv grid w/ masked tail
    ]
    for idx, (shape, ks, sg, bt) in enumerate(configs):
        key, sub = jax.random.split(key)
        x = jax.random.uniform(sub, shape, dtype=jnp.float32)
        blur = GaussianBlur2d(kernel_size=ks, sigma=sg, border_type=bt)
        y = jax.block_until_ready(blur(x))
        y_ref = _reference_blur(x, ks, sg, bt)
        assert y.shape == x.shape and y.dtype == x.dtype
        assert jnp.allclose(y, y_ref, atol=1e-5, rtol=1e-5), \
            f"mismatch vs reference for config {idx} ({bt})"
    print("KERNEL_OK")
</pallas_src>

<mosaic_0001>
module attributes {stable_mosaic.version = 11 : i64} {
  func.func @_gaussian_blur_kernel(%arg0: i32, %arg1: memref<2x32x128xf32, #tpu.memory_space<vmem>>, %arg2: memref<2x32x128xf32, #tpu.memory_space<vmem>>) attributes {dimension_semantics = [#tpu.dimension_semantics<parallel>], iteration_bounds = array<i64: 4>, scalar_prefetch = 0 : i64, scratch_operands = 0 : i64, tpu.core_type = #tpu.core_type<tc>, window_params = [{transform_indices = @transform_0, window_bounds = array<i64: 2, 32, 128>}, {transform_indices = @transform_1, window_bounds = array<i64: 2, 32, 128>}]} {
    %c0 = arith.constant 0 : index
    %c0_0 = arith.constant 0 : index
    %c0_1 = arith.constant 0 : index
    %0 = vector.load %arg1[%c0, %c0_0, %c0_1] : memref<2x32x128xf32, #tpu.memory_space<vmem>>, vector<2x32x128xf32>
    %cst = arith.constant 0.384397328 : f32
    %1 = vector.broadcast %cst : f32 to vector<2x32x128xf32>
    %2 = arith.mulf %1, %0 : vector<2x32x128xf32>
    %c127_i32 = arith.constant 127 : i32
    %3 = tpu.dynamic_rotate %0 by %c127_i32 dim 2 : vector<2x32x128xf32>, i32 -> vector<2x32x128xf32>
    %c1_i32 = arith.constant 1 : i32
    %4 = tpu.dynamic_rotate %0 by %c1_i32 dim 2 : vector<2x32x128xf32>, i32 -> vector<2x32x128xf32>
    %5 = arith.addf %3, %4 : vector<2x32x128xf32>
    %cst_2 = arith.constant 0.307801336 : f32
    %6 = vector.broadcast %cst_2 : f32 to vector<2x32x128xf32>
    %7 = arith.mulf %6, %5 : vector<2x32x128xf32>
    %8 = arith.addf %2, %7 : vector<2x32x128xf32>
    %9 = tpu.iota {dimensions = array<i32: 2>} : vector<2x32x128xi32>
    %c0_i32 = arith.constant 0 : i32
    %10 = vector.broadcast %c0_i32 : i32 to vector<2x32x128xi32>
    %11 = arith.cmpi eq, %9, %10 : vector<2x32x128xi32>
    %12 = vector.extract_strided_slice %0 {offsets = [0, 0, 1], sizes = [2, 32, 1], strides = [1, 1, 1]} : vector<2x32x128xf32> to vector<2x32x1xf32>
    %cst_3 = arith.constant 0.307801336 : f32
    %13 = vector.broadcast %cst_3 : f32 to vector<2x32x1xf32>
    %14 = arith.mulf %13, %12 : vector<2x32x1xf32>
    %15 = vector.extract_strided_slice %0 {offsets = [0, 0, 0], sizes = [2, 32, 1], strides = [1, 1, 1]} : vector<2x32x128xf32> to vector<2x32x1xf32>
    %cst_4 = arith.constant 0.384397328 : f32
    %16 = vector.broadcast %cst_4 : f32 to vector<2x32x1xf32>
    %17 = arith.mulf %16, %15 : vector<2x32x1xf32>
    %18 = arith.addf %14, %17 : vector<2x32x1xf32>
    %19 = vector.extract_strided_slice %0 {offsets = [0, 0, 1], sizes = [2, 32, 1], strides = [1, 1, 1]} : vector<2x32x128xf32> to vector<2x32x1xf32>
    %cst_5 = arith.constant 0.307801336 : f32
    %20 = vector.broadcast %cst_5 : f32 to vector<2x32x1xf32>
    %21 = arith.mulf %20, %19 : vector<2x32x1xf32>
    %22 = arith.addf %18, %21 : vector<2x32x1xf32>
    %23 = vector.shape_cast %22 : vector<2x32x1xf32> to vector<2x32x1xf32>
    %24 = vector.broadcast %23 : vector<2x32x1xf32> to vector<2x32x128xf32>
    %25 = arith.select %11, %24, %8 : vector<2x32x128xi1>, vector<2x32x128xf32>
    %c127_i32_6 = arith.constant 127 : i32
    %26 = vector.broadcast %c127_i32_6 : i32 to vector<2x32x128xi32>
    %27 = arith.cmpi eq, %9, %26 : vector<2x32x128xi32>
    %28 = vector.extract_strided_slice %0 {offsets = [0, 0, 126], sizes = [2, 32, 1], strides = [1, 1, 1]} : vector<2x32x128xf32> to vector<2x32x1xf32>
    %cst_7 = arith.constant 0.307801336 : f32
    %29 = vector.broadcast %cst_7 : f32 to vector<2x32x1xf32>
    %30 = arith.mulf %29, %28 : vector<2x32x1xf32>
    %31 = vector.extract_strided_slice %0 {offsets = [0, 0, 127], sizes = [2, 32, 1], strides = [1, 1, 1]} : vector<2x32x128xf32> to vector<2x32x1xf32>
    %cst_8 = arith.constant 0.384397328 : f32
    %32 = vector.broadcast %cst_8 : f32 to vector<2x32x1xf32>
    %33 = arith.mulf %32, %31 : vector<2x32x1xf32>
    %34 = arith.addf %30, %33 : vector<2x32x1xf32>
    %35 = vector.extract_strided_slice %0 {offsets = [0, 0, 126], sizes = [2, 32, 1], strides = [1, 1, 1]} : vector<2x32x128xf32> to vector<2x32x1xf32>
    %cst_9 = arith.constant 0.307801336 : f32
    %36 = vector.broadcast %cst_9 : f32 to vector<2x32x1xf32>
    %37 = arith.mulf %36, %35 : vector<2x32x1xf32>
    %38 = arith.addf %34, %37 : vector<2x32x1xf32>
    %39 = vector.shape_cast %38 : vector<2x32x1xf32> to vector<2x32x1xf32>
    %40 = vector.broadcast %39 : vector<2x32x1xf32> to vector<2x32x128xf32>
    %41 = arith.select %27, %40, %25 : vector<2x32x128xi1>, vector<2x32x128xf32>
    %cst_10 = arith.constant 0.384397328 : f32
    %42 = vector.broadcast %cst_10 : f32 to vector<2x32x128xf32>
    %43 = arith.mulf %42, %41 : vector<2x32x128xf32>
    %c31_i32 = arith.constant 31 : i32
    %44 = tpu.dynamic_rotate %41 by %c31_i32 dim 1 : vector<2x32x128xf32>, i32 -> vector<2x32x128xf32>
    %c1_i32_11 = arith.constant 1 : i32
    %45 = tpu.dynamic_rotate %41 by %c1_i32_11 dim 1 : vector<2x32x128xf32>, i32 -> vector<2x32x128xf32>
    %46 = arith.addf %44, %45 : vector<2x32x128xf32>
    %cst_12 = arith.constant 0.307801336 : f32
    %47 = vector.broadcast %cst_12 : f32 to vector<2x32x128xf32>
    %48 = arith.mulf %47, %46 : vector<2x32x128xf32>
    %49 = arith.addf %43, %48 : vector<2x32x128xf32>
    %50 = tpu.iota {dimensions = array<i32: 1>} : vector<2x32x128xi32>
    %c0_i32_13 = arith.constant 0 : i32
    %51 = vector.broadcast %c0_i32_13 : i32 to vector<2x32x128xi32>
    %52 = arith.cmpi eq, %50, %51 : vector<2x32x128xi32>
    %53 = vector.extract_strided_slice %41 {offsets = [0, 1, 0], sizes = [2, 1, 128], strides = [1, 1, 1]} : vector<2x32x128xf32> to vector<2x1x128xf32>
    %cst_14 = arith.constant 0.307801336 : f32
    %54 = vector.broadcast %cst_14 : f32 to vector<2x1x128xf32>
    %55 = arith.mulf %54, %53 : vector<2x1x128xf32>
    %56 = vector.extract_strided_slice %41 {offsets = [0, 0, 0], sizes = [2, 1, 128], strides = [1, 1, 1]} : vector<2x32x128xf32> to vector<2x1x128xf32>
    %cst_15 = arith.constant 0.384397328 : f32
    %57 = vector.broadcast %cst_15 : f32 to vector<2x1x128xf32>
    %58 = arith.mulf %57, %56 : vector<2x1x128xf32>
    %59 = arith.addf %55, %58 : vector<2x1x128xf32>
    %60 = vector.extract_strided_slice %41 {offsets = [0, 1, 0], sizes = [2, 1, 128], strides = [1, 1, 1]} : vector<2x32x128xf32> to vector<2x1x128xf32>
    %cst_16 = arith.constant 0.307801336 : f32
    %61 = vector.broadcast %cst_16 : f32 to vector<2x1x128xf32>
    %62 = arith.mulf %61, %60 : vector<2x1x128xf32>
    %63 = arith.addf %59, %62 : vector<2x1x128xf32>
    %64 = vector.shape_cast %63 : vector<2x1x128xf32> to vector<2x1x128xf32>
    %65 = vector.broadcast %64 : vector<2x1x128xf32> to vector<2x32x128xf32>
    %66 = arith.select %52, %65, %49 : vector<2x32x128xi1>, vector<2x32x128xf32>
    %c31_i32_17 = arith.constant 31 : i32
    %67 = vector.broadcast %c31_i32_17 : i32 to vector<2x32x128xi32>
    %68 = arith.cmpi eq, %50, %67 : vector<2x32x128xi32>
    %69 = vector.extract_strided_slice %41 {offsets = [0, 30, 0], sizes = [2, 1, 128], strides = [1, 1, 1]} : vector<2x32x128xf32> to vector<2x1x128xf32>
    %cst_18 = arith.constant 0.307801336 : f32
    %70 = vector.broadcast %cst_18 : f32 to vector<2x1x128xf32>
    %71 = arith.mulf %70, %69 : vector<2x1x128xf32>
    %72 = vector.extract_strided_slice %41 {offsets = [0, 31, 0], sizes = [2, 1, 128], strides = [1, 1, 1]} : vector<2x32x128xf32> to vector<2x1x128xf32>
    %cst_19 = arith.constant 0.384397328 : f32
    %73 = vector.broadcast %cst_19 : f32 to vector<2x1x128xf32>
    %74 = arith.mulf %73, %72 : vector<2x1x128xf32>
    %75 = arith.addf %71, %74 : vector<2x1x128xf32>
    %76 = vector.extract_strided_slice %41 {offsets = [0, 30, 0], sizes = [2, 1, 128], strides = [1, 1, 1]} : vector<2x32x128xf32> to vector<2x1x128xf32>
    %cst_20 = arith.constant 0.307801336 : f32
    %77 = vector.broadcast %cst_20 : f32 to vector<2x1x128xf32>
    %78 = arith.mulf %77, %76 : vector<2x1x128xf32>
    %79 = arith.addf %75, %78 : vector<2x1x128xf32>
    %80 = vector.shape_cast %79 : vector<2x1x128xf32> to vector<2x1x128xf32>
    %81 = vector.broadcast %80 : vector<2x1x128xf32> to vector<2x32x128xf32>
    %82 = arith.select %68, %81, %66 : vector<2x32x128xi1>, vector<2x32x128xf32>
    %c0_21 = arith.constant 0 : index
    %c0_22 = arith.constant 0 : index
    %c0_23 = arith.constant 0 : index
    %83 = vector.load %arg2[%c0_21, %c0_22, %c0_23] : memref<2x32x128xf32, #tpu.memory_space<vmem>>, vector<2x32x128xf32>
    tpu.vector_store %arg2[%c0_21, %c0_22, %c0_23], %82 {strides = array<i32>} : memref<2x32x128xf32, #tpu.memory_space<vmem>>, vector<2x32x128xf32>,
    return
  }
  func.func @transform_0(%arg0: i32) -> (i32, i32, i32) {
    %c0_i32 = arith.constant 0 : i32
    %c0_i32_0 = arith.constant 0 : i32
    %c0_i32_1 = arith.constant 0 : i32
    return %arg0, %c0_i32, %c0_i32_0 : i32, i32, i32
  }
  func.func @transform_1(%arg0: i32) -> (i32, i32, i32) {
    %c0_i32 = arith.constant 0 : i32
    %c0_i32_0 = arith.constant 0 : i32
    %c0_i32_1 = arith.constant 0 : i32
    return %arg0, %c0_i32, %c0_i32_0 : i32, i32, i32
  }
}

module attributes {stable_mosaic.version = 11 : i64} {
  func.func @_gaussian_blur_kernel(%arg0: i32, %arg1: memref<2x32x128xf32, #tpu.memory_space<vmem>>, %arg2: memref<2x32x128xf32, #tpu.memory_space<vmem>>) attributes {dimension_semantics = [#tpu.dimension_semantics<parallel>], iteration_bounds = array<i64: 4>, scalar_prefetch = 0 : i64, scratch_operands = 0 : i64, tpu.core_type = #tpu.core_type<tc>, window_params = [{transform_indices = @transform_0, window_bounds = array<i64: 2, 32, 128>}, {transform_indices = @transform_1, window_bounds = array<i64: 2, 32, 128>}]} {
    %c0 = arith.constant 0 : index
    %c0_0 = arith.constant 0 : index
    %c0_1 = arith.constant 0 : index
    %0 = vector.load %arg1[%c0, %c0_0, %c0_1] : memref<2x32x128xf32, #tpu.memory_space<vmem>>, vector<2x32x128xf32>
    %cst = arith.constant 0.384397328 : f32
    %1 = vector.broadcast %cst : f32 to vector<2x32x128xf32>
    %2 = arith.mulf %1, %0 : vector<2x32x128xf32>
    %3 = vector.extract_strided_slice %0 {offsets = [0, 0, 1], sizes = [2, 32, 127], strides = [1, 1, 1]} : vector<2x32x128xf32> to vector<2x32x127xf32>
    %4 = vector.extract_strided_slice %0 {offsets = [0, 0, 0], sizes = [2, 32, 1], strides = [1, 1, 1]} : vector<2x32x128xf32> to vector<2x32x1xf32>
    %5 = tpu.concatenate %3, %4 in 2 : vector<2x32x127xf32>, vector<2x32x1xf32> -> vector<2x32x128xf32>
    %6 = vector.extract_strided_slice %0 {offsets = [0, 0, 127], sizes = [2, 32, 1], strides = [1, 1, 1]} : vector<2x32x128xf32> to vector<2x32x1xf32>
    %7 = vector.extract_strided_slice %0 {offsets = [0, 0, 0], sizes = [2, 32, 127], strides = [1, 1, 1]} : vector<2x32x128xf32> to vector<2x32x127xf32>
    %8 = tpu.concatenate %6, %7 in 2 : vector<2x32x1xf32>, vector<2x32x127xf32> -> vector<2x32x128xf32>
    %9 = arith.addf %5, %8 : vector<2x32x128xf32>
    %cst_2 = arith.constant 0.307801336 : f32
    %10 = vector.broadcast %cst_2 : f32 to vector<2x32x128xf32>
    %11 = arith.mulf %10, %9 : vector<2x32x128xf32>
    %12 = arith.addf %2, %11 : vector<2x32x128xf32>
    %13 = tpu.iota {dimensions = array<i32: 2>} : vector<2x32x128xi32>
    %c0_i32 = arith.constant 0 : i32
    %14 = vector.broadcast %c0_i32 : i32 to vector<2x32x128xi32>
    %15 = arith.cmpi eq, %13, %14 : vector<2x32x128xi32>
    %16 = vector.extract_strided_slice %0 {offsets = [0, 0, 1], sizes = [2, 32, 1], strides = [1, 1, 1]} : vector<2x32x128xf32> to vector<2x32x1xf32>
    %cst_3 = arith.constant 0.307801336 : f32
    %17 = vector.broadcast %cst_3 : f32 to vector<2x32x1xf32>
    %18 = arith.mulf %17, %16 : vector<2x32x1xf32>
    %19 = vector.extract_strided_slice %0 {offsets = [0, 0, 0], sizes = [2, 32, 1], strides = [1, 1, 1]} : vector<2x32x128xf32> to vector<2x32x1xf32>
    %cst_4 = arith.constant 0.384397328 : f32
    %20 = vector.broadcast %cst_4 : f32 to vector<2x32x1xf32>
    %21 = arith.mulf %20, %19 : vector<2x32x1xf32>
    %22 = arith.addf %18, %21 : vector<2x32x1xf32>
    %23 = vector.extract_strided_slice %0 {offsets = [0, 0, 1], sizes = [2, 32, 1], strides = [1, 1, 1]} : vector<2x32x128xf32> to vector<2x32x1xf32>
    %cst_5 = arith.constant 0.307801336 : f32
    %24 = vector.broadcast %cst_5 : f32 to vector<2x32x1xf32>
    %25 = arith.mulf %24, %23 : vector<2x32x1xf32>
    %26 = arith.addf %22, %25 : vector<2x32x1xf32>
    %27 = vector.shape_cast %26 : vector<2x32x1xf32> to vector<2x32x1xf32>
    %28 = vector.broadcast %27 : vector<2x32x1xf32> to vector<2x32x128xf32>
    %29 = arith.select %15, %28, %12 : vector<2x32x128xi1>, vector<2x32x128xf32>
    %c127_i32 = arith.constant 127 : i32
    %30 = vector.broadcast %c127_i32 : i32 to vector<2x32x128xi32>
    %31 = arith.cmpi eq, %13, %30 : vector<2x32x128xi32>
    %32 = vector.extract_strided_slice %0 {offsets = [0, 0, 126], sizes = [2, 32, 1], strides = [1, 1, 1]} : vector<2x32x128xf32> to vector<2x32x1xf32>
    %cst_6 = arith.constant 0.307801336 : f32
    %33 = vector.broadcast %cst_6 : f32 to vector<2x32x1xf32>
    %34 = arith.mulf %33, %32 : vector<2x32x1xf32>
    %35 = vector.extract_strided_slice %0 {offsets = [0, 0, 127], sizes = [2, 32, 1], strides = [1, 1, 1]} : vector<2x32x128xf32> to vector<2x32x1xf32>
    %cst_7 = arith.constant 0.384397328 : f32
    %36 = vector.broadcast %cst_7 : f32 to vector<2x32x1xf32>
    %37 = arith.mulf %36, %35 : vector<2x32x1xf32>
    %38 = arith.addf %34, %37 : vector<2x32x1xf32>
    %39 = vector.extract_strided_slice %0 {offsets = [0, 0, 126], sizes = [2, 32, 1], strides = [1, 1, 1]} : vector<2x32x128xf32> to vector<2x32x1xf32>
    %cst_8 = arith.constant 0.307801336 : f32
    %40 = vector.broadcast %cst_8 : f32 to vector<2x32x1xf32>
    %41 = arith.mulf %40, %39 : vector<2x32x1xf32>
    %42 = arith.addf %38, %41 : vector<2x32x1xf32>
    %43 = vector.shape_cast %42 : vector<2x32x1xf32> to vector<2x32x1xf32>
    %44 = vector.broadcast %43 : vector<2x32x1xf32> to vector<2x32x128xf32>
    %45 = arith.select %31, %44, %29 : vector<2x32x128xi1>, vector<2x32x128xf32>
    %cst_9 = arith.constant 0.384397328 : f32
    %46 = vector.broadcast %cst_9 : f32 to vector<2x32x128xf32>
    %47 = arith.mulf %46, %45 : vector<2x32x128xf32>
    %48 = vector.extract_strided_slice %45 {offsets = [0, 1, 0], sizes = [2, 31, 128], strides = [1, 1, 1]} : vector<2x32x128xf32> to vector<2x31x128xf32>
    %49 = vector.extract_strided_slice %45 {offsets = [0, 0, 0], sizes = [2, 1, 128], strides = [1, 1, 1]} : vector<2x32x128xf32> to vector<2x1x128xf32>
    %50 = tpu.concatenate %48, %49 in 1 : vector<2x31x128xf32>, vector<2x1x128xf32> -> vector<2x32x128xf32>
    %51 = vector.extract_strided_slice %45 {offsets = [0, 31, 0], sizes = [2, 1, 128], strides = [1, 1, 1]} : vector<2x32x128xf32> to vector<2x1x128xf32>
    %52 = vector.extract_strided_slice %45 {offsets = [0, 0, 0], sizes = [2, 31, 128], strides = [1, 1, 1]} : vector<2x32x128xf32> to vector<2x31x128xf32>
    %53 = tpu.concatenate %51, %52 in 1 : vector<2x1x128xf32>, vector<2x31x128xf32> -> vector<2x32x128xf32>
    %54 = arith.addf %50, %53 : vector<2x32x128xf32>
    %cst_10 = arith.constant 0.307801336 : f32
    %55 = vector.broadcast %cst_10 : f32 to vector<2x32x128xf32>
    %56 = arith.mulf %55, %54 : vector<2x32x128xf32>
    %57 = arith.addf %47, %56 : vector<2x32x128xf32>
    %58 = tpu.iota {dimensions = array<i32: 1>} : vector<2x32x128xi32>
    %c0_i32_11 = arith.constant 0 : i32
    %59 = vector.broadcast %c0_i32_11 : i32 to vector<2x32x128xi32>
    %60 = arith.cmpi eq, %58, %59 : vector<2x32x128xi32>
    %61 = vector.extract_strided_slice %45 {offsets = [0, 1, 0], sizes = [2, 1, 128], strides = [1, 1, 1]} : vector<2x32x128xf32> to vector<2x1x128xf32>
    %cst_12 = arith.constant 0.307801336 : f32
    %62 = vector.broadcast %cst_12 : f32 to vector<2x1x128xf32>
    %63 = arith.mulf %62, %61 : vector<2x1x128xf32>
    %64 = vector.extract_strided_slice %45 {offsets = [0, 0, 0], sizes = [2, 1, 128], strides = [1, 1, 1]} : vector<2x32x128xf32> to vector<2x1x128xf32>
    %cst_13 = arith.constant 0.384397328 : f32
    %65 = vector.broadcast %cst_13 : f32 to vector<2x1x128xf32>
    %66 = arith.mulf %65, %64 : vector<2x1x128xf32>
    %67 = arith.addf %63, %66 : vector<2x1x128xf32>
    %68 = vector.extract_strided_slice %45 {offsets = [0, 1, 0], sizes = [2, 1, 128], strides = [1, 1, 1]} : vector<2x32x128xf32> to vector<2x1x128xf32>
    %cst_14 = arith.constant 0.307801336 : f32
    %69 = vector.broadcast %cst_14 : f32 to vector<2x1x128xf32>
    %70 = arith.mulf %69, %68 : vector<2x1x128xf32>
    %71 = arith.addf %67, %70 : vector<2x1x128xf32>
    %72 = vector.shape_cast %71 : vector<2x1x128xf32> to vector<2x1x128xf32>
    %73 = vector.broadcast %72 : vector<2x1x128xf32> to vector<2x32x128xf32>
    %74 = arith.select %60, %73, %57 : vector<2x32x128xi1>, vector<2x32x128xf32>
    %c31_i32 = arith.constant 31 : i32
    %75 = vector.broadcast %c31_i32 : i32 to vector<2x32x128xi32>
    %76 = arith.cmpi eq, %58, %75 : vector<2x32x128xi32>
    %77 = vector.extract_strided_slice %45 {offsets = [0, 30, 0], sizes = [2, 1, 128], strides = [1, 1, 1]} : vector<2x32x128xf32> to vector<2x1x128xf32>
    %cst_15 = arith.constant 0.307801336 : f32
    %78 = vector.broadcast %cst_15 : f32 to vector<2x1x128xf32>
    %79 = arith.mulf %78, %77 : vector<2x1x128xf32>
    %80 = vector.extract_strided_slice %45 {offsets = [0, 31, 0], sizes = [2, 1, 128], strides = [1, 1, 1]} : vector<2x32x128xf32> to vector<2x1x128xf32>
    %cst_16 = arith.constant 0.384397328 : f32
    %81 = vector.broadcast %cst_16 : f32 to vector<2x1x128xf32>
    %82 = arith.mulf %81, %80 : vector<2x1x128xf32>
    %83 = arith.addf %79, %82 : vector<2x1x128xf32>
    %84 = vector.extract_strided_slice %45 {offsets = [0, 30, 0], sizes = [2, 1, 128], strides = [1, 1, 1]} : vector<2x32x128xf32> to vector<2x1x128xf32>
    %cst_17 = arith.constant 0.307801336 : f32
    %85 = vector.broadcast %cst_17 : f32 to vector<2x1x128xf32>
    %86 = arith.mulf %85, %84 : vector<2x1x128xf32>
    %87 = arith.addf %83, %86 : vector<2x1x128xf32>
    %88 = vector.shape_cast %87 : vector<2x1x128xf32> to vector<2x1x128xf32>
    %89 = vector.broadcast %88 : vector<2x1x128xf32> to vector<2x32x128xf32>
    %90 = arith.select %76, %89, %74 : vector<2x32x128xi1>, vector<2x32x128xf32>
    %c0_18 = arith.constant 0 : index
    %c0_19 = arith.constant 0 : index
    %c0_20 = arith.constant 0 : index
    %91 = vector.load %arg2[%c0_18, %c0_19, %c0_20] : memref<2x32x128xf32, #tpu.memory_space<vmem>>, vector<2x32x128xf32>
    tpu.vector_store %arg2[%c0_18, %c0_19, %c0_20], %90 {strides = array<i32>} : memref<2x32x128xf32, #tpu.memory_space<vmem>>, vector<2x32x128xf32>,
    return
  }
  func.func @transform_0(%arg0: i32) -> (i32, i32, i32) {
    %c0_i32 = arith.constant 0 : i32
    %c0_i32_0 = arith.constant 0 : i32
    %c0_i32_1 = arith.constant 0 : i32
    return %arg0, %c0_i32, %c0_i32_0 : i32, i32, i32
  }
  func.func @transform_1(%arg0: i32) -> (i32, i32, i32) {
    %c0_i32 = arith.constant 0 : i32
    %c0_i32_0 = arith.constant 0 : i32
    %c0_i32_1 = arith.constant 0 : i32
    return %arg0, %c0_i32, %c0_i32_0 : i32, i32, i32
  }
}

</mosaic_0001>

<llo_original>
// kernel: tpu_custom_call.1
$region0: #{tpu_custom_call.1}
  #allocation0 [shape = 'u32[]', space=smem, size = 0x4, offset = 0x4, fixed_abs, tag = 'smem constant byte address 0x4 - core index']
  #allocation1 [shape = 'u32[72,128]{1,0:T(1,128)}', space=vmem, size = 0x9000, scoped, tag = 'internal scratch']
  %s0 = inlined_call_operand.hbm [shape: f32[8,32,128], index: 0, kind: input, shape index: {}]
  %s1 = inlined_call_operand.hbm [shape: f32[8,32,128], index: 1, kind: output, shape index: {}]
  %s2 = sld [smem:[#allocation0]]
  $region41: #{tpu_custom_call.1} parent=0
    _
  %s4 = ssub.s32 1, %s2
  %s5 = scalar_select 0, %s4, %s2
  $region1: #{tpu_custom_call.1} parent=0
    #allocation2 [shape = 'u8[65536]{0}', space=vmem, size = 0x10000, scoped, tag = 'input window, operand 0']
    #allocation3 [shape = 's32[2]{0}', space=sflag, size = 0x8, scoped, tag = 'scoped memory for tpu_custom_call.1']
    #allocation4 [shape = 's32[2]{0}', space=sflag, size = 0x8, scoped, tag = 'scoped memory for tpu_custom_call.1']
    #allocation5 [shape = 'u8[65536]{0}', space=vmem, size = 0x10000, scoped, tag = 'output window, operand 0']
    %6 = vsyncpa [#allocation3], 0
    %s7 = scalar_lea.sflag [#allocation3], 1
    %8 = vsyncpa %s7, 0
    %9 = vsyncpa [#allocation4], 0
    %s10 = scalar_lea.sflag [#allocation4], 1
    %11 = vsyncpa %s10, 0
    loop: start=0, step=1, limit=6
    $region2: #{tpu_custom_call.1} parent=1 // loop_pre_header
      _
    $region3: #{tpu_custom_call.1} parent=1 // loop_header
      %s13 = sphi 0, %s17
      %p14 = scmp.ge.s32.totalorder %s13, 6
      %s23 = sphi 0, %s25
      %s26 = sphi 0, %s23
      %s27 = sphi 0, %s26
      %s43 = sphi 0, %s27
      %s49 = sphi 0, %s51
      %s52 = sphi 0, %s49
      %s53 = sphi 0, %s52
      %s69 = sphi 0, %s53
    $region4: #{tpu_custom_call.1} parent=1 // loop_header_branch
      %16 = sbr.rel (%p14) target = $region8
    $region5: #{tpu_custom_call.1} parent=1 // loop_body
      %s18 = ssub.s32 %s13, 1
      %s19 = ssub.s32 %s13, 2
      %s20 = sadd.s32 %s13, 1
      %s21 = ssub.s32 %s13, %s20
      %p22 = scmp.eq.s32.totalorder %s21, 0
      %s24 = sadd.s32 %s23, 1
      %s25 = scalar_select %p22, %s23, %s24
      %p28 = pneg %p22
      %p29 = scmp.eq.s32.totalorder %s13, 3
      %p30 = por %p28, %p29
      %p31 = scmp.ne.s32.totalorder %s23, %s26
      %p32 = scmp.eq.s32.totalorder %s13, 0
      %p33 = por %p31, %p32
      %p34 = scmp.ne.s32.totalorder %s23, %s26
      %p35 = scmp.eq.s32.totalorder %s18, 3
      %p36 = por %p34, %p35
      %p37 = scmp.ne.s32.totalorder %s26, %s27
      %p38 = scmp.eq.s32.totalorder %s18, 0
      %p39 = por %p37, %p38
      %p40 = scmp.ne.s32.totalorder %s26, %s27
      %p41 = scmp.eq.s32.totalorder %s19, 3
      %p42 = por %p40, %p41
      %p44 = scmp.ne.s32.totalorder %s27, %s43
      %p45 = scmp.eq.s32.totalorder %s19, 0
      %p46 = por %p44, %p45
      %s47 = ssub.s32 %s13, %s20
      %p48 = scmp.eq.s32.totalorder %s47, 0
      %s50 = sadd.s32 %s49, 1
      %s51 = scalar_select %p48, %s49, %s50
      %p54 = pneg %p48
      %p55 = scmp.eq.s32.totalorder %s13, 3
      %p56 = por %p54, %p55
      %p57 = scmp.ne.s32.totalorder %s49, %s52
      %p58 = scmp.eq.s32.totalorder %s13, 0
      %p59 = por %p57, %p58
      %p60 = scmp.ne.s32.totalorder %s49, %s52
      %p61 = scmp.eq.s32.totalorder %s18, 3
      %p62 = por %p60, %p61
      %p63 = scmp.ne.s32.totalorder %s52, %s53
      %p64 = scmp.eq.s32.totalorder %s18, 0
      %p65 = por %p63, %p64
      %p66 = scmp.ne.s32.totalorder %s52, %s53
      %p67 = scmp.eq.s32.totalorder %s19, 3
      %p68 = por %p66, %p67
      %p70 = scmp.ne.s32.totalorder %s53, %s69
      %p71 = scmp.eq.s32.totalorder %s19, 0
      %p72 = por %p70, %p71
      %p73 = scmp.le.s32.totalorder 1, %s13
      %p74 = scmp.lt.s32.totalorder %s13, 5
      %p75 = pnand %p73, %p74
      %p76 = pneg %p75
      // Predicated region
      $region9: #{tpu_custom_call.1} parent=5 // pred_check
        _
      $region10: #{tpu_custom_call.1} parent=5 // pred_check_branch
        %78 = sbr.rel (%p75) target = $region12
      $region11: #{tpu_custom_call.1} parent=5 // pred_region
        %s79 = ssub.s32 %s13, 1
      $region12: #{tpu_custom_call.1} parent=5 // pred_fallthru
        _
      %p80 = scmp.lt.s32.totalorder %s13, 4
      // Predicated region
      $region13: #{tpu_custom_call.1} parent=5 // pred_check
        %p81 = pneg %p80
      $region14: #{tpu_custom_call.1} parent=5 // pred_check_branch
        %83 = sbr.rel (%p81) target = $region16
      $region15: #{tpu_custom_call.1} parent=5 // pred_region
        // Predicated region
        $region17: #{tpu_custom_call.1} parent=15 // pred_check
          %p84 = pneg %p33
        $region18: #{tpu_custom_call.1} parent=15 // pred_check_branch
          %86 = sbr.rel (%p84) target = $region20
        $region19: #{tpu_custom_call.1} parent=15 // pred_region
          %s87 = sand.u32 %s23, 1
          %s88 = scalar_lea.sflag [#allocation3], %s87
          %s89 = sand.u32 %s23, 1
          %s90 = smul.addr %s89, 64
          %s91 = scalar_lea.vmem [#allocation2], %s90
          %s92 = smul.u32 2, %s13
          %94 = vsyncadd %s88, 0
          %s95 = smul.addr %s92, 4
          %s96 = smul.addr %s95, 8
          %s97 = scalar_lea.hbm %s0, %s96
          %s98 = sshll.u32 %s97, 4
          %s99 = int_to_ptr.hbm [resolvable:$true] %s98
          %s100 = sshll.u32 %s91, 4
          %s101 = int_to_ptr.vmem [resolvable:$true] %s100
          %106 = dma.hbm_to_vmem [thread:$0]  %s99, 1024, %s101, %s88, 128, 128, 8
        $region20: #{tpu_custom_call.1} parent=15 // pred_fallthru
          _
      $region16: #{tpu_custom_call.1} parent=5 // pred_fallthru
        _
      %p107 = scmp.le.s32.totalorder 1, %s13
      %p108 = scmp.lt.s32.totalorder %s13, 5
      %p109 = pnand %p107, %p108
      %p110 = pneg %p109
      // Predicated region
      $region21: #{tpu_custom_call.1} parent=5 // pred_check
        _
      $region22: #{tpu_custom_call.1} parent=5 // pred_check_branch
        %112 = sbr.rel (%p109) target = $region24
      $region23: #{tpu_custom_call.1} parent=5 // pred_region
        %s113 = ssub.s32 %s13, 1
        %s114 = sand.u32 %s26, 1
        %s115 = scalar_lea.sflag [#allocation3], %s114
        %s116 = sand.u32 %s26, 1
        %s117 = smul.addr %s116, 64
        %s118 = scalar_lea.vmem [#allocation2], %s117
        // Predicated region
        $region25: #{tpu_custom_call.1} parent=23 // pred_check
          %p119 = pneg %p39
        $region26: #{tpu_custom_call.1} parent=23 // pred_check_branch
          %121 = sbr.rel (%p119) target = $region28
        $region27: #{tpu_custom_call.1} parent=23 // pred_region
          %123 = dma.done %s115, 1024
        $region28: #{tpu_custom_call.1} parent=23 // pred_fallthru
          _
        %s124 = sand.u32 %s26, 1
        %s125 = scalar_lea.sflag [#allocation3], %s124
        %s126 = sand.u32 %s26, 1
        %s127 = smul.addr %s126, 64
        %s128 = scalar_lea.vmem [#allocation2], %s127
        %p129 = pneg %p39
        %p130 = pneg %p36
        %p131 = pneg %p65
        %p132 = pneg %p62
        %s133 = sand.u32 %s52, 1
        %s134 = scalar_lea.sflag [#allocation4], %s133
        %s135 = sand.u32 %s52, 1
        %s136 = smul.addr %s135, 64
        %s137 = scalar_lea.vmem [#allocation5], %s136
        %s138 = smul.u32 2, %s18
        %s139 = smul.u32 2, %s18
        %v140 = vld [vmem:[%s118] sm:$0xff]
        %v141 = vld [vmem:[%s118 + $0x8] sm:$0xff]
        %v142 = vld [vmem:[%s118 + $0x10] sm:$0xff]
        %v143 = vld [vmem:[%s118 + $0x18] sm:$0xff]
        %v144 = vld [vmem:[%s118 + $0x20] sm:$0xff]
        %v145 = vld [vmem:[%s118 + $0x28] sm:$0xff]
        %v146 = vld [vmem:[%s118 + $0x30] sm:$0xff]
        %v147 = vld [vmem:[%s118 + $0x38] sm:$0xff]
        %v148 = vmul.f32 %v140, 0.38439733
        %v149 = vmul.f32 %v141, 0.38439733
        %v150 = vmul.f32 %v142, 0.38439733
        %v151 = vmul.f32 %v143, 0.38439733
        %v152 = vmul.f32 %v144, 0.38439733
        %v153 = vmul.f32 %v145, 0.38439733
        %v154 = vmul.f32 %v146, 0.38439733
        %v155 = vmul.f32 %v147, 0.38439733
        %156 = vrot.lane.b32.xlu0 %v140, 127
        %v157 = vpop.permute.xlu0 %156
        %158 = vrot.lane.b32.xlu0 %v141, 127
        %v159 = vpop.permute.xlu0 %158
        %160 = vrot.lane.b32.xlu0 %v142, 127
        %v161 = vpop.permute.xlu0 %160
        %162 = vrot.lane.b32.xlu0 %v143, 127
        %v163 = vpop.permute.xlu0 %162
        %164 = vrot.lane.b32.xlu0 %v144, 127
        %v165 = vpop.permute.xlu0 %164
        %166 = vrot.lane.b32.xlu0 %v145, 127
        %v167 = vpop.permute.xlu0 %166
        %168 = vrot.lane.b32.xlu0 %v146, 127
        %v169 = vpop.permute.xlu0 %168
        %170 = vrot.lane.b32.xlu0 %v147, 127
        %v171 = vpop.permute.xlu0 %170
        %172 = vrot.lane.b32.xlu0 %v140, 1
        %v173 = vpop.permute.xlu0 %172
        %174 = vrot.lane.b32.xlu0 %v141, 1
        %v175 = vpop.permute.xlu0 %174
        %176 = vrot.lane.b32.xlu0 %v142, 1
        %v177 = vpop.permute.xlu0 %176
        %178 = vrot.lane.b32.xlu0 %v143, 1
        %v179 = vpop.permute.xlu0 %178
        %180 = vrot.lane.b32.xlu0 %v144, 1
        %v181 = vpop.permute.xlu0 %180
        %182 = vrot.lane.b32.xlu0 %v145, 1
        %v183 = vpop.permute.xlu0 %182
        %184 = vrot.lane.b32.xlu0 %v146, 1
        %v185 = vpop.permute.xlu0 %184
        %186 = vrot.lane.b32.xlu0 %v147, 1
        %v187 = vpop.permute.xlu0 %186
        %v188 = vadd.f32 %v157, %v173
        %v189 = vadd.f32 %v159, %v175
        %v190 = vadd.f32 %v161, %v177
        %v191 = vadd.f32 %v163, %v179
        %v192 = vadd.f32 %v165, %v181
        %v193 = vadd.f32 %v167, %v183
        %v194 = vadd.f32 %v169, %v185
        %v195 = vadd.f32 %v171, %v187
        %v196 = vmul.f32 %v188, 0.30780134
        %v197 = vmul.f32 %v189, 0.30780134
        %v198 = vmul.f32 %v190, 0.30780134
        %v199 = vmul.f32 %v191, 0.30780134
        %v200 = vmul.f32 %v192, 0.30780134
        %v201 = vmul.f32 %v193, 0.30780134
        %v202 = vmul.f32 %v194, 0.30780134
        %v203 = vmul.f32 %v195, 0.30780134
        %v204 = vadd.f32 %v148, %v196
        %v205 = vadd.f32 %v149, %v197
        %v206 = vadd.f32 %v150, %v198
        %v207 = vadd.f32 %v151, %v199
        %v208 = vadd.f32 %v152, %v200
        %v209 = vadd.f32 %v153, %v201
        %v210 = vadd.f32 %v154, %v202
        %v211 = vadd.f32 %v155, %v203
        %v212 = vlaneseq
        %v213 = vand.u32 %v212, 127
        %vm214 = vcmp.eq.s32.totalorder %v213, 0
        %v215 = vmul.f32 %v140, 0.30780134
        %v216 = vmul.f32 %v141, 0.30780134
        %v217 = vmul.f32 %v142, 0.30780134
        %v218 = vmul.f32 %v143, 0.30780134
        %v219 = vmul.f32 %v144, 0.30780134
        %v220 = vmul.f32 %v145, 0.30780134
        %v221 = vmul.f32 %v146, 0.30780134
        %v222 = vmul.f32 %v147, 0.30780134
        %231 = vrot.lane.b32.xlu0 %v148, 1
        %v232 = vpop.permute.xlu0 %231
        %233 = vrot.lane.b32.xlu0 %v149, 1
        %v234 = vpop.permute.xlu0 %233
        %235 = vrot.lane.b32.xlu0 %v150, 1
        %v236 = vpop.permute.xlu0 %235
        %237 = vrot.lane.b32.xlu0 %v151, 1
        %v238 = vpop.permute.xlu0 %237
        %239 = vrot.lane.b32.xlu0 %v152, 1
        %v240 = vpop.permute.xlu0 %239
        %241 = vrot.lane.b32.xlu0 %v153, 1
        %v242 = vpop.permute.xlu0 %241
        %243 = vrot.lane.b32.xlu0 %v154, 1
        %v244 = vpop.permute.xlu0 %243
        %245 = vrot.lane.b32.xlu0 %v155, 1
        %v246 = vpop.permute.xlu0 %245
        %v255 = vadd.f32 %v215, %v232
        %v256 = vadd.f32 %v216, %v234
        %v257 = vadd.f32 %v217, %v236
        %v258 = vadd.f32 %v218, %v238
        %v259 = vadd.f32 %v219, %v240
        %v260 = vadd.f32 %v220, %v242
        %v261 = vadd.f32 %v221, %v244
        %v262 = vadd.f32 %v222, %v246
        %v263 = vadd.f32 %v255, %v215
        %v264 = vadd.f32 %v256, %v216
        %v265 = vadd.f32 %v257, %v217
        %v266 = vadd.f32 %v258, %v218
        %v267 = vadd.f32 %v259, %v219
        %v268 = vadd.f32 %v260, %v220
        %v269 = vadd.f32 %v261, %v221
        %v270 = vadd.f32 %v262, %v222
        %272 = vset.pattern.permute.xlu0 1
        %273 = vperm.xlu0 %272, %v263
        %v274 = vpop.permute.xlu0 %273
        %277 = vset.pattern.permute.xlu0 1
        %278 = vperm.xlu0 %277, %v264
        %v279 = vpop.permute.xlu0 %278
        %282 = vset.pattern.permute.xlu0 1
        %283 = vperm.xlu0 %282, %v265
        %v284 = vpop.permute.xlu0 %283
        %287 = vset.pattern.permute.xlu0 1
        %288 = vperm.xlu0 %287, %v266
        %v289 = vpop.permute.xlu0 %288
        %292 = vset.pattern.permute.xlu0 1
        %293 = vperm.xlu0 %292, %v267
        %v294 = vpop.permute.xlu0 %293
        %297 = vset.pattern.permute.xlu0 1
        %298 = vperm.xlu0 %297, %v268
        %v299 = vpop.permute.xlu0 %298
        %302 = vset.pattern.permute.xlu0 1
        %303 = vperm.xlu0 %302, %v269
        %v304 = vpop.permute.xlu0 %303
        %307 = vset.pattern.permute.xlu0 1
        %308 = vperm.xlu0 %307, %v270
        %v309 = vpop.permute.xlu0 %308
        %v311 = vsel %vm214, %v274, %v204
        %v312 = vsel %vm214, %v279, %v205
        %v313 = vsel %vm214, %v284, %v206
        %v314 = vsel %vm214, %v289, %v207
        %v315 = vsel %vm214, %v294, %v208
        %v316 = vsel %vm214, %v299, %v209
        %v317 = vsel %vm214, %v304, %v210
        %v318 = vsel %vm214, %v309, %v211
        %vm319 = vcmp.eq.s32.totalorder %v213, 127
        %320 = vrot.lane.b32.xlu0 %v148, 127
        %v321 = vpop.permute.xlu0 %320
        %322 = vrot.lane.b32.xlu0 %v149, 127
        %v323 = vpop.permute.xlu0 %322
        %324 = vrot.lane.b32.xlu0 %v150, 127
        %v325 = vpop.permute.xlu0 %324
        %326 = vrot.lane.b32.xlu0 %v151, 127
        %v327 = vpop.permute.xlu0 %326
        %328 = vrot.lane.b32.xlu0 %v152, 127
        %v329 = vpop.permute.xlu0 %328
        %330 = vrot.lane.b32.xlu0 %v153, 127
        %v331 = vpop.permute.xlu0 %330
        %332 = vrot.lane.b32.xlu0 %v154, 127
        %v333 = vpop.permute.xlu0 %332
        %334 = vrot.lane.b32.xlu0 %v155, 127
        %v335 = vpop.permute.xlu0 %334
        %v344 = vadd.f32 %v215, %v321
        %v345 = vadd.f32 %v216, %v323
        %v346 = vadd.f32 %v217, %v325
        %v347 = vadd.f32 %v218, %v327
        %v348 = vadd.f32 %v219, %v329
        %v349 = vadd.f32 %v220, %v331
        %v350 = vadd.f32 %v221, %v333
        %v351 = vadd.f32 %v222, %v335
        %v352 = vadd.f32 %v344, %v215
        %v353 = vadd.f32 %v345, %v216
        %v354 = vadd.f32 %v346, %v217
        %v355 = vadd.f32 %v347, %v218
        %v356 = vadd.f32 %v348, %v219
        %v357 = vadd.f32 %v349, %v220
        %v358 = vadd.f32 %v350, %v221
        %v359 = vadd.f32 %v351, %v222
        %361 = vset.pattern.permute.xlu0 126
        %362 = vperm.xlu0 %361, %v352
        %v363 = vpop.permute.xlu0 %362
        %366 = vset.pattern.permute.xlu0 126
        %367 = vperm.xlu0 %366, %v353
        %v368 = vpop.permute.xlu0 %367
        %371 = vset.pattern.permute.xlu0 126
        %372 = vperm.xlu0 %371, %v354
        %v373 = vpop.permute.xlu0 %372
        %376 = vset.pattern.permute.xlu0 126
        %377 = vperm.xlu0 %376, %v355
        %v378 = vpop.permute.xlu0 %377
        %381 = vset.pattern.permute.xlu0 126
        %382 = vperm.xlu0 %381, %v356
        %v383 = vpop.permute.xlu0 %382
        %386 = vset.pattern.permute.xlu0 126
        %387 = vperm.xlu0 %386, %v357
        %v388 = vpop.permute.xlu0 %387
        %391 = vset.pattern.permute.xlu0 126
        %392 = vperm.xlu0 %391, %v358
        %v393 = vpop.permute.xlu0 %392
        %396 = vset.pattern.permute.xlu0 126
        %397 = vperm.xlu0 %396, %v359
        %v398 = vpop.permute.xlu0 %397
        %v400 = vsel %vm319, %v363, %v311
        %v401 = vsel %vm319, %v368, %v312
        %v402 = vsel %vm319, %v373, %v313
        %v403 = vsel %vm319, %v378, %v314
        %v404 = vsel %vm319, %v383, %v315
        %v405 = vsel %vm319, %v388, %v316
        %v406 = vsel %vm319, %v393, %v317
        %v407 = vsel %vm319, %v398, %v318
        %v408 = vmul.f32 %v400, 0.38439733
        %v409 = vmul.f32 %v401, 0.38439733
        %v410 = vmul.f32 %v402, 0.38439733
        %v411 = vmul.f32 %v403, 0.38439733
        %v412 = vmul.f32 %v404, 0.38439733
        %v413 = vmul.f32 %v405, 0.38439733
        %v414 = vmul.f32 %v406, 0.38439733
        %v415 = vmul.f32 %v407, 0.38439733
        %v416 = vrot.slane %v400, 1
        %v417 = vrot.slane %v404, 1
        %v418 = vrot.slane %v401, 1
        %v419 = vrot.slane %v405, 1
        %v420 = vrot.slane %v402, 1
        %v421 = vrot.slane %v406, 1
        %v422 = vrot.slane %v403, 1
        %v423 = vrot.slane %v407, 1
        %v424 = vlaneseq
        %v425 = vshrl.u32 %v424, 7
        %vm426 = vcmp.lt.s32.totalorder %v425, 7
        %v427 = vsel %vm426, %v420, %v422
        %v428 = vsel %vm426, %v421, %v423
        %v429 = vsel %vm426, %v418, %v420
        %v430 = vsel %vm426, %v419, %v421
        %v431 = vsel %vm426, %v416, %v418
        %v432 = vsel %vm426, %v417, %v419
        %v433 = vsel %vm426, %v422, %v416
        %v434 = vsel %vm426, %v423, %v417
        %v435 = vrot.slane %v400, 7
        %v436 = vrot.slane %v404, 7
        %v437 = vrot.slane %v401, 7
        %v438 = vrot.slane %v405, 7
        %v439 = vrot.slane %v402, 7
        %v440 = vrot.slane %v406, 7
        %v441 = vrot.slane %v403, 7
        %v442 = vrot.slane %v407, 7
        %vm443 = vcmp.lt.s32.totalorder %v425, 1
        %v444 = vsel %vm443, %v439, %v441
        %v445 = vsel %vm443, %v440, %v442
        %v446 = vsel %vm443, %v437, %v439
        %v447 = vsel %vm443, %v438, %v440
        %v448 = vsel %vm443, %v435, %v437
        %v449 = vsel %vm443, %v436, %v438
        %v450 = vsel %vm443, %v441, %v435
        %v451 = vsel %vm443, %v442, %v436
        %v452 = vadd.f32 %v431, %v450
        %v453 = vadd.f32 %v429, %v448
        %v454 = vadd.f32 %v427, %v446
        %v455 = vadd.f32 %v433, %v444
        %v456 = vadd.f32 %v432, %v451
        %v457 = vadd.f32 %v430, %v449
        %v458 = vadd.f32 %v428, %v447
        %v459 = vadd.f32 %v434, %v445
        %v460 = vmul.f32 %v452, 0.30780134
        %v461 = vmul.f32 %v453, 0.30780134
        %v462 = vmul.f32 %v454, 0.30780134
        %v463 = vmul.f32 %v455, 0.30780134
        %v464 = vmul.f32 %v456, 0.30780134
        %v465 = vmul.f32 %v457, 0.30780134
        %v466 = vmul.f32 %v458, 0.30780134
        %v467 = vmul.f32 %v459, 0.30780134
        %v468 = vadd.f32 %v408, %v460
        %v469 = vadd.f32 %v409, %v461
        %v470 = vadd.f32 %v410, %v462
        %v471 = vadd.f32 %v411, %v463
        %v472 = vadd.f32 %v412, %v464
        %v473 = vadd.f32 %v413, %v465
        %v474 = vadd.f32 %v414, %v466
        %v475 = vadd.f32 %v415, %v467
        %v476 = vadd.s32 %v425, 8
        %v477 = vadd.s32 %v425, 16
        %v478 = vadd.s32 %v425, 24
        %vm479 = vcmp.eq.s32.totalorder %v425, 0
        %vm480 = vcmp.eq.s32.totalorder %v476, 0
        %vm481 = vcmp.eq.s32.totalorder %v477, 0
        %vm482 = vcmp.eq.s32.totalorder %v478, 0
        %v483 = vmul.f32 %v400, 0.30780134
        %v484 = vmul.f32 %v404, 0.30780134
        %v487 = vrot.slane %v408, 7
        %v488 = vrot.slane %v412, 7
        %v491 = vadd.f32 %v483, %v487
        %v492 = vadd.f32 %v484, %v488
        %v493 = vadd.f32 %v491, %v483
        %v494 = vadd.f32 %v492, %v484
        %v495 = vperm.slane %v493, 1
        %v496 = vperm.slane %v494, 1
        %v497 = vsel %vm479, %v495, %v468
        %v498 = vsel %vm480, %v495, %v469
        %v499 = vsel %vm481, %v495, %v470
        %v500 = vsel %vm482, %v495, %v471
        %v501 = vsel %vm479, %v496, %v472
        %v502 = vsel %vm480, %v496, %v473
        %v503 = vsel %vm481, %v496, %v474
        %v504 = vsel %vm482, %v496, %v475
        %vm505 = vcmp.eq.s32.totalorder %v425, 31
        %vm506 = vcmp.eq.s32.totalorder %v476, 31
        %vm507 = vcmp.eq.s32.totalorder %v477, 31
        %vm508 = vcmp.eq.s32.totalorder %v478, 31
        %v509 = vmul.f32 %v403, 0.30780134
        %v510 = vmul.f32 %v407, 0.30780134
        %v513 = vrot.slane %v411, 1
        %v514 = vrot.slane %v415, 1
        %v517 = vadd.f32 %v509, %v513
        %v518 = vadd.f32 %v510, %v514
        %v519 = vadd.f32 %v517, %v509
        %v520 = vadd.f32 %v518, %v510
        %v521 = vperm.slane %v519, 6
        %v522 = vperm.slane %v520, 6
        %v523 = vsel %vm505, %v521, %v497
        %v524 = vsel %vm506, %v521, %v498
        %v525 = vsel %vm507, %v521, %v499
        %v526 = vsel %vm508, %v521, %v500
        %v527 = vsel %vm505, %v522, %v501
        %v528 = vsel %vm506, %v522, %v502
        %v529 = vsel %vm507, %v522, %v503
        %v530 = vsel %vm508, %v522, %v504
        %531 = vst [vmem:[%s137] sm:$0xff] %v523
        %532 = vst [vmem:[%s137 + $0x8] sm:$0xff] %v524
        %533 = vst [vmem:[%s137 + $0x10] sm:$0xff] %v525
        %534 = vst [vmem:[%s137 + $0x18] sm:$0xff] %v526
        %535 = vst [vmem:[%s137 + $0x20] sm:$0xff] %v527
        %536 = vst [vmem:[%s137 + $0x28] sm:$0xff] %v528
        %537 = vst [vmem:[%s137 + $0x30] sm:$0xff] %v529
        %538 = vst [vmem:[%s137 + $0x38] sm:$0xff] %v530
        %s539 = sand.u32 %s52, 1
        %s540 = scalar_lea.sflag [#allocation4], %s539
        %s541 = sand.u32 %s52, 1
        %s542 = smul.addr %s541, 64
        %s543 = scalar_lea.vmem [#allocation5], %s542
        // Predicated region
        $region29: #{tpu_custom_call.1} parent=23 // pred_check
          %p544 = pneg %p62
        $region30: #{tpu_custom_call.1} parent=23 // pred_check_branch
          %546 = sbr.rel (%p544) target = $region32
        $region31: #{tpu_custom_call.1} parent=23 // pred_region
          %s547 = smul.u32 2, %s18
          %549 = vsyncadd %s540, 0
          %s550 = smul.addr %s547, 4
          %s551 = smul.addr %s550, 8
          %s552 = scalar_lea.hbm %s1, %s551
          %s553 = sshll.u32 %s543, 4
          %s554 = int_to_ptr.vmem [resolvable:$true] %s553
          %s555 = sshll.u32 %s552, 4
          %s556 = int_to_ptr.hbm [resolvable:$true] %s555
          %561 = dma.vmem_to_hbm [thread:$0]  %s554, 1024, %s556, %s540, 128, 128, 8
        $region32: #{tpu_custom_call.1} parent=23 // pred_fallthru
          _
      $region24: #{tpu_custom_call.1} parent=5 // pred_fallthru
        _
      %p562 = scmp.le.s32.totalorder 2, %s13
      // Predicated region
      $region33: #{tpu_custom_call.1} parent=5 // pred_check
        %p563 = pneg %p562
      $region34: #{tpu_custom_call.1} parent=5 // pred_check_branch
        %565 = sbr.rel (%p563) target = $region36
      $region35: #{tpu_custom_call.1} parent=5 // pred_region
        %s566 = ssub.s32 %s13, 2
        // Predicated region
        $region37: #{tpu_custom_call.1} parent=35 // pred_check
          %p567 = pneg %p68
        $region38: #{tpu_custom_call.1} parent=35 // pred_check_branch
          %569 = sbr.rel (%p567) target = $region40
        $region39: #{tpu_custom_call.1} parent=35 // pred_region
          %s570 = sand.u32 %s53, 1
          %s571 = scalar_lea.sflag [#allocation4], %s570
          %s572 = sand.u32 %s53, 1
          %s573 = smul.addr %s572, 64
          %s574 = scalar_lea.vmem [#allocation5], %s573
          %576 = dma.done %s571, 1024
        $region40: #{tpu_custom_call.1} parent=35 // pred_fallthru
          _
      $region36: #{tpu_custom_call.1} parent=5 // pred_fallthru
        _
    $region6: #{tpu_custom_call.1} parent=1 // loop_footer
      %s17 = sadd.s32 1, %s13
    $region7: #{tpu_custom_call.1} parent=1 // loop_footer_branch
      %12 = sbr.rel target = $region3
    $region8: #{tpu_custom_call.1} parent=1 // loop_exit
      _
    %577 = vsyncpa [#allocation3], 1
    %s578 = scalar_lea.sflag [#allocation3], 1
    %579 = vsyncpa %s578, 1
    %580 = vsyncpa [#allocation4], 1
    %s581 = scalar_lea.sflag [#allocation4], 1
    %582 = vsyncpa %s581, 1

// kernel: tpu_custom_call.1
$region0: #{tpu_custom_call.1}
  #allocation0 [shape = 'u32[]', space=smem, size = 0x4, offset = 0x4, fixed_abs, tag = 'smem constant byte address 0x4 - core index']
  #allocation1 [shape = 'u32[72,128]{1,0:T(1,128)}', space=vmem, size = 0x9000, scoped, tag = 'internal scratch']
  %s0 = inlined_call_operand.hbm [shape: f32[8,32,128], index: 0, kind: input, shape index: {}]
  %s1 = inlined_call_operand.hbm [shape: f32[8,32,128], index: 1, kind: output, shape index: {}]
  %s2 = sld [smem:[#allocation0]]
  $region41: #{tpu_custom_call.1} parent=0
    _
  %s4 = ssub.s32 1, %s2
  %s5 = scalar_select 0, %s4, %s2
  $region1: #{tpu_custom_call.1} parent=0
    #allocation2 [shape = 'u8[65536]{0}', space=vmem, size = 0x10000, scoped, tag = 'input window, operand 0']
    #allocation3 [shape = 's32[2]{0}', space=sflag, size = 0x8, scoped, tag = 'scoped memory for tpu_custom_call.1']
    #allocation4 [shape = 's32[2]{0}', space=sflag, size = 0x8, scoped, tag = 'scoped memory for tpu_custom_call.1']
    #allocation5 [shape = 'u8[65536]{0}', space=vmem, size = 0x10000, scoped, tag = 'output window, operand 0']
    %6 = vsyncpa [#allocation3], 0
    %s7 = scalar_lea.sflag [#allocation3], 1
    %8 = vsyncpa %s7, 0
    %9 = vsyncpa [#allocation4], 0
    %s10 = scalar_lea.sflag [#allocation4], 1
    %11 = vsyncpa %s10, 0
    loop: start=0, step=1, limit=6
    $region2: #{tpu_custom_call.1} parent=1 // loop_pre_header
      _
    $region3: #{tpu_custom_call.1} parent=1 // loop_header
      %s13 = sphi 0, %s17
      %p14 = scmp.ge.s32.totalorder %s13, 6
      %s23 = sphi 0, %s25
      %s26 = sphi 0, %s23
      %s27 = sphi 0, %s26
      %s43 = sphi 0, %s27
      %s49 = sphi 0, %s51
      %s52 = sphi 0, %s49
      %s53 = sphi 0, %s52
      %s69 = sphi 0, %s53
    $region4: #{tpu_custom_call.1} parent=1 // loop_header_branch
      %16 = sbr.rel (%p14) target = $region8
    $region5: #{tpu_custom_call.1} parent=1 // loop_body
      %s18 = ssub.s32 %s13, 1
      %s19 = ssub.s32 %s13, 2
      %s20 = sadd.s32 %s13, 1
      %s21 = ssub.s32 %s13, %s20
      %p22 = scmp.eq.s32.totalorder %s21, 0
      %s24 = sadd.s32 %s23, 1
      %s25 = scalar_select %p22, %s23, %s24
      %p28 = pneg %p22
      %p29 = scmp.eq.s32.totalorder %s13, 3
      %p30 = por %p28, %p29
      %p31 = scmp.ne.s32.totalorder %s23, %s26
      %p32 = scmp.eq.s32.totalorder %s13, 0
      %p33 = por %p31, %p32
      %p34 = scmp.ne.s32.totalorder %s23, %s26
      %p35 = scmp.eq.s32.totalorder %s18, 3
      %p36 = por %p34, %p35
      %p37 = scmp.ne.s32.totalorder %s26, %s27
      %p38 = scmp.eq.s32.totalorder %s18, 0
      %p39 = por %p37, %p38
      %p40 = scmp.ne.s32.totalorder %s26, %s27
      %p41 = scmp.eq.s32.totalorder %s19, 3
      %p42 = por %p40, %p41
      %p44 = scmp.ne.s32.totalorder %s27, %s43
      %p45 = scmp.eq.s32.totalorder %s19, 0
      %p46 = por %p44, %p45
      %s47 = ssub.s32 %s13, %s20
      %p48 = scmp.eq.s32.totalorder %s47, 0
      %s50 = sadd.s32 %s49, 1
      %s51 = scalar_select %p48, %s49, %s50
      %p54 = pneg %p48
      %p55 = scmp.eq.s32.totalorder %s13, 3
      %p56 = por %p54, %p55
      %p57 = scmp.ne.s32.totalorder %s49, %s52
      %p58 = scmp.eq.s32.totalorder %s13, 0
      %p59 = por %p57, %p58
      %p60 = scmp.ne.s32.totalorder %s49, %s52
      %p61 = scmp.eq.s32.totalorder %s18, 3
      %p62 = por %p60, %p61
      %p63 = scmp.ne.s32.totalorder %s52, %s53
      %p64 = scmp.eq.s32.totalorder %s18, 0
      %p65 = por %p63, %p64
      %p66 = scmp.ne.s32.totalorder %s52, %s53
      %p67 = scmp.eq.s32.totalorder %s19, 3
      %p68 = por %p66, %p67
      %p70 = scmp.ne.s32.totalorder %s53, %s69
      %p71 = scmp.eq.s32.totalorder %s19, 0
      %p72 = por %p70, %p71
      %p73 = scmp.le.s32.totalorder 1, %s13
      %p74 = scmp.lt.s32.totalorder %s13, 5
      %p75 = pnand %p73, %p74
      %p76 = pneg %p75
      // Predicated region
      $region9: #{tpu_custom_call.1} parent=5 // pred_check
        _
      $region10: #{tpu_custom_call.1} parent=5 // pred_check_branch
        %78 = sbr.rel (%p75) target = $region12
      $region11: #{tpu_custom_call.1} parent=5 // pred_region
        %s79 = ssub.s32 %s13, 1
      $region12: #{tpu_custom_call.1} parent=5 // pred_fallthru
        _
      %p80 = scmp.lt.s32.totalorder %s13, 4
      // Predicated region
      $region13: #{tpu_custom_call.1} parent=5 // pred_check
        %p81 = pneg %p80
      $region14: #{tpu_custom_call.1} parent=5 // pred_check_branch
        %83 = sbr.rel (%p81) target = $region16
      $region15: #{tpu_custom_call.1} parent=5 // pred_region
        // Predicated region
        $region17: #{tpu_custom_call.1} parent=15 // pred_check
          %p84 = pneg %p33
        $region18: #{tpu_custom_call.1} parent=15 // pred_check_branch
          %86 = sbr.rel (%p84) target = $region20
        $region19: #{tpu_custom_call.1} parent=15 // pred_region
          %s87 = sand.u32 %s23, 1
          %s88 = scalar_lea.sflag [#allocation3], %s87
          %s89 = sand.u32 %s23, 1
          %s90 = smul.addr %s89, 64
          %s91 = scalar_lea.vmem [#allocation2], %s90
          %s92 = smul.u32 2, %s13
          %94 = vsyncadd %s88, 0
          %s95 = smul.addr %s92, 4
          %s96 = smul.addr %s95, 8
          %s97 = scalar_lea.hbm %s0, %s96
          %s98 = sshll.u32 %s97, 4
          %s99 = int_to_ptr.hbm [resolvable:$true] %s98
          %s100 = sshll.u32 %s91, 4
          %s101 = int_to_ptr.vmem [resolvable:$true] %s100
          %106 = dma.hbm_to_vmem [thread:$0]  %s99, 1024, %s101, %s88, 128, 128, 8
        $region20: #{tpu_custom_call.1} parent=15 // pred_fallthru
          _
      $region16: #{tpu_custom_call.1} parent=5 // pred_fallthru
        _
      %p107 = scmp.le.s32.totalorder 1, %s13
      %p108 = scmp.lt.s32.totalorder %s13, 5
      %p109 = pnand %p107, %p108
      %p110 = pneg %p109
      // Predicated region
      $region21: #{tpu_custom_call.1} parent=5 // pred_check
        _
      $region22: #{tpu_custom_call.1} parent=5 // pred_check_branch
        %112 = sbr.rel (%p109) target = $region24
      $region23: #{tpu_custom_call.1} parent=5 // pred_region
        %s113 = ssub.s32 %s13, 1
        %s114 = sand.u32 %s26, 1
        %s115 = scalar_lea.sflag [#allocation3], %s114
        %s116 = sand.u32 %s26, 1
        %s117 = smul.addr %s116, 64
        %s118 = scalar_lea.vmem [#allocation2], %s117
        // Predicated region
        $region25: #{tpu_custom_call.1} parent=23 // pred_check
          %p119 = pneg %p39
        $region26: #{tpu_custom_call.1} parent=23 // pred_check_branch
          %121 = sbr.rel (%p119) target = $region28
        $region27: #{tpu_custom_call.1} parent=23 // pred_region
          %123 = dma.done %s115, 1024
        $region28: #{tpu_custom_call.1} parent=23 // pred_fallthru
          _
        %s124 = sand.u32 %s26, 1
        %s125 = scalar_lea.sflag [#allocation3], %s124
        %s126 = sand.u32 %s26, 1
        %s127 = smul.addr %s126, 64
        %s128 = scalar_lea.vmem [#allocation2], %s127
        %p129 = pneg %p39
        %p130 = pneg %p36
        %p131 = pneg %p65
        %p132 = pneg %p62
        %s133 = sand.u32 %s52, 1
        %s134 = scalar_lea.sflag [#allocation4], %s133
        %s135 = sand.u32 %s52, 1
        %s136 = smul.addr %s135, 64
        %s137 = scalar_lea.vmem [#allocation5], %s136
        %s138 = smul.u32 2, %s18
        %s139 = smul.u32 2, %s18
        %v140 = vld [vmem:[%s118] sm:$0xff]
        %v141 = vld [vmem:[%s118 + $0x8] sm:$0xff]
        %v142 = vld [vmem:[%s118 + $0x10] sm:$0xff]
        %v143 = vld [vmem:[%s118 + $0x18] sm:$0xff]
        %v144 = vld [vmem:[%s118 + $0x20] sm:$0xff]
        %v145 = vld [vmem:[%s118 + $0x28] sm:$0xff]
        %v146 = vld [vmem:[%s118 + $0x30] sm:$0xff]
        %v147 = vld [vmem:[%s118 + $0x38] sm:$0xff]
        %v148 = vmul.f32 %v140, 0.38439733
        %v149 = vmul.f32 %v141, 0.38439733
        %v150 = vmul.f32 %v142, 0.38439733
        %v151 = vmul.f32 %v143, 0.38439733
        %v152 = vmul.f32 %v144, 0.38439733
        %v153 = vmul.f32 %v145, 0.38439733
        %v154 = vmul.f32 %v146, 0.38439733
        %v155 = vmul.f32 %v147, 0.38439733
        %164 = vrot.lane.b32.xlu0 %v140, 127
        %v165 = vpop.permute.xlu0 %164
        %166 = vrot.lane.b32.xlu0 %v141, 127
        %v167 = vpop.permute.xlu0 %166
        %168 = vrot.lane.b32.xlu0 %v142, 127
        %v169 = vpop.permute.xlu0 %168
        %170 = vrot.lane.b32.xlu0 %v143, 127
        %v171 = vpop.permute.xlu0 %170
        %172 = vrot.lane.b32.xlu0 %v144, 127
        %v173 = vpop.permute.xlu0 %172
        %174 = vrot.lane.b32.xlu0 %v145, 127
        %v175 = vpop.permute.xlu0 %174
        %176 = vrot.lane.b32.xlu0 %v146, 127
        %v177 = vpop.permute.xlu0 %176
        %178 = vrot.lane.b32.xlu0 %v147, 127
        %v179 = vpop.permute.xlu0 %178
        %188 = vrot.lane.b32.xlu0 %v140, 1
        %v189 = vpop.permute.xlu0 %188
        %190 = vrot.lane.b32.xlu0 %v141, 1
        %v191 = vpop.permute.xlu0 %190
        %192 = vrot.lane.b32.xlu0 %v142, 1
        %v193 = vpop.permute.xlu0 %192
        %194 = vrot.lane.b32.xlu0 %v143, 1
        %v195 = vpop.permute.xlu0 %194
        %196 = vrot.lane.b32.xlu0 %v144, 1
        %v197 = vpop.permute.xlu0 %196
        %198 = vrot.lane.b32.xlu0 %v145, 1
        %v199 = vpop.permute.xlu0 %198
        %200 = vrot.lane.b32.xlu0 %v146, 1
        %v201 = vpop.permute.xlu0 %200
        %202 = vrot.lane.b32.xlu0 %v147, 1
        %v203 = vpop.permute.xlu0 %202
        %v212 = vadd.f32 %v165, %v189
        %v213 = vadd.f32 %v167, %v191
        %v214 = vadd.f32 %v169, %v193
        %v215 = vadd.f32 %v171, %v195
        %v216 = vadd.f32 %v173, %v197
        %v217 = vadd.f32 %v175, %v199
        %v218 = vadd.f32 %v177, %v201
        %v219 = vadd.f32 %v179, %v203
        %v220 = vmul.f32 %v212, 0.30780134
        %v221 = vmul.f32 %v213, 0.30780134
        %v222 = vmul.f32 %v214, 0.30780134
        %v223 = vmul.f32 %v215, 0.30780134
        %v224 = vmul.f32 %v216, 0.30780134
        %v225 = vmul.f32 %v217, 0.30780134
        %v226 = vmul.f32 %v218, 0.30780134
        %v227 = vmul.f32 %v219, 0.30780134
        %v228 = vadd.f32 %v148, %v220
        %v229 = vadd.f32 %v149, %v221
        %v230 = vadd.f32 %v150, %v222
        %v231 = vadd.f32 %v151, %v223
        %v232 = vadd.f32 %v152, %v224
        %v233 = vadd.f32 %v153, %v225
        %v234 = vadd.f32 %v154, %v226
        %v235 = vadd.f32 %v155, %v227
        %v236 = vlaneseq
        %v237 = vand.u32 %v236, 127
        %vm238 = vcmp.eq.s32.totalorder %v237, 0
        %v239 = vmul.f32 %v140, 0.30780134
        %v240 = vmul.f32 %v141, 0.30780134
        %v241 = vmul.f32 %v142, 0.30780134
        %v242 = vmul.f32 %v143, 0.30780134
        %v243 = vmul.f32 %v144, 0.30780134
        %v244 = vmul.f32 %v145, 0.30780134
        %v245 = vmul.f32 %v146, 0.30780134
        %v246 = vmul.f32 %v147, 0.30780134
        %255 = vrot.lane.b32.xlu0 %v148, 1
        %v256 = vpop.permute.xlu0 %255
        %257 = vrot.lane.b32.xlu0 %v149, 1
        %v258 = vpop.permute.xlu0 %257
        %259 = vrot.lane.b32.xlu0 %v150, 1
        %v260 = vpop.permute.xlu0 %259
        %261 = vrot.lane.b32.xlu0 %v151, 1
        %v262 = vpop.permute.xlu0 %261
        %263 = vrot.lane.b32.xlu0 %v152, 1
        %v264 = vpop.permute.xlu0 %263
        %265 = vrot.lane.b32.xlu0 %v153, 1
        %v266 = vpop.permute.xlu0 %265
        %267 = vrot.lane.b32.xlu0 %v154, 1
        %v268 = vpop.permute.xlu0 %267
        %269 = vrot.lane.b32.xlu0 %v155, 1
        %v270 = vpop.permute.xlu0 %269
        %v279 = vadd.f32 %v239, %v256
        %v280 = vadd.f32 %v240, %v258
        %v281 = vadd.f32 %v241, %v260
        %v282 = vadd.f32 %v242, %v262
        %v283 = vadd.f32 %v243, %v264
        %v284 = vadd.f32 %v244, %v266
        %v285 = vadd.f32 %v245, %v268
        %v286 = vadd.f32 %v246, %v270
        %v287 = vadd.f32 %v279, %v239
        %v288 = vadd.f32 %v280, %v240
        %v289 = vadd.f32 %v281, %v241
        %v290 = vadd.f32 %v282, %v242
        %v291 = vadd.f32 %v283, %v243
        %v292 = vadd.f32 %v284, %v244
        %v293 = vadd.f32 %v285, %v245
        %v294 = vadd.f32 %v286, %v246
        %296 = vset.pattern.permute.xlu0 1
        %297 = vperm.xlu0 %296, %v287
        %v298 = vpop.permute.xlu0 %297
        %301 = vset.pattern.permute.xlu0 1
        %302 = vperm.xlu0 %301, %v288
        %v303 = vpop.permute.xlu0 %302
        %306 = vset.pattern.permute.xlu0 1
        %307 = vperm.xlu0 %306, %v289
        %v308 = vpop.permute.xlu0 %307
        %311 = vset.pattern.permute.xlu0 1
        %312 = vperm.xlu0 %311, %v290
        %v313 = vpop.permute.xlu0 %312
        %316 = vset.pattern.permute.xlu0 1
        %317 = vperm.xlu0 %316, %v291
        %v318 = vpop.permute.xlu0 %317
        %321 = vset.pattern.permute.xlu0 1
        %322 = vperm.xlu0 %321, %v292
        %v323 = vpop.permute.xlu0 %322
        %326 = vset.pattern.permute.xlu0 1
        %327 = vperm.xlu0 %326, %v293
        %v328 = vpop.permute.xlu0 %327
        %331 = vset.pattern.permute.xlu0 1
        %332 = vperm.xlu0 %331, %v294
        %v333 = vpop.permute.xlu0 %332
        %v335 = vsel %vm238, %v298, %v228
        %v336 = vsel %vm238, %v303, %v229
        %v337 = vsel %vm238, %v308, %v230
        %v338 = vsel %vm238, %v313, %v231
        %v339 = vsel %vm238, %v318, %v232
        %v340 = vsel %vm238, %v323, %v233
        %v341 = vsel %vm238, %v328, %v234
        %v342 = vsel %vm238, %v333, %v235
        %vm343 = vcmp.eq.s32.totalorder %v237, 127
        %344 = vrot.lane.b32.xlu0 %v148, 127
        %v345 = vpop.permute.xlu0 %344
        %346 = vrot.lane.b32.xlu0 %v149, 127
        %v347 = vpop.permute.xlu0 %346
        %348 = vrot.lane.b32.xlu0 %v150, 127
        %v349 = vpop.permute.xlu0 %348
        %350 = vrot.lane.b32.xlu0 %v151, 127
        %v351 = vpop.permute.xlu0 %350
        %352 = vrot.lane.b32.xlu0 %v152, 127
        %v353 = vpop.permute.xlu0 %352
        %354 = vrot.lane.b32.xlu0 %v153, 127
        %v355 = vpop.permute.xlu0 %354
        %356 = vrot.lane.b32.xlu0 %v154, 127
        %v357 = vpop.permute.xlu0 %356
        %358 = vrot.lane.b32.xlu0 %v155, 127
        %v359 = vpop.permute.xlu0 %358
        %v368 = vadd.f32 %v239, %v345
        %v369 = vadd.f32 %v240, %v347
        %v370 = vadd.f32 %v241, %v349
        %v371 = vadd.f32 %v242, %v351
        %v372 = vadd.f32 %v243, %v353
        %v373 = vadd.f32 %v244, %v355
        %v374 = vadd.f32 %v245, %v357
        %v375 = vadd.f32 %v246, %v359
        %v376 = vadd.f32 %v368, %v239
        %v377 = vadd.f32 %v369, %v240
        %v378 = vadd.f32 %v370, %v241
        %v379 = vadd.f32 %v371, %v242
        %v380 = vadd.f32 %v372, %v243
        %v381 = vadd.f32 %v373, %v244
        %v382 = vadd.f32 %v374, %v245
        %v383 = vadd.f32 %v375, %v246
        %385 = vset.pattern.permute.xlu0 126
        %386 = vperm.xlu0 %385, %v376
        %v387 = vpop.permute.xlu0 %386
        %390 = vset.pattern.permute.xlu0 126
        %391 = vperm.xlu0 %390, %v377
        %v392 = vpop.permute.xlu0 %391
        %395 = vset.pattern.permute.xlu0 126
        %396 = vperm.xlu0 %395, %v378
        %v397 = vpop.permute.xlu0 %396
        %400 = vset.pattern.permute.xlu0 126
        %401 = vperm.xlu0 %400, %v379
        %v402 = vpop.permute.xlu0 %401
        %405 = vset.pattern.permute.xlu0 126
        %406 = vperm.xlu0 %405, %v380
        %v407 = vpop.permute.xlu0 %406
        %410 = vset.pattern.permute.xlu0 126
        %411 = vperm.xlu0 %410, %v381
        %v412 = vpop.permute.xlu0 %411
        %415 = vset.pattern.permute.xlu0 126
        %416 = vperm.xlu0 %415, %v382
        %v417 = vpop.permute.xlu0 %416
        %420 = vset.pattern.permute.xlu0 126
        %421 = vperm.xlu0 %420, %v383
        %v422 = vpop.permute.xlu0 %421
        %v424 = vsel %vm343, %v387, %v335
        %v425 = vsel %vm343, %v392, %v336
        %v426 = vsel %vm343, %v397, %v337
        %v427 = vsel %vm343, %v402, %v338
        %v428 = vsel %vm343, %v407, %v339
        %v429 = vsel %vm343, %v412, %v340
        %v430 = vsel %vm343, %v417, %v341
        %v431 = vsel %vm343, %v422, %v342
        %v432 = vmul.f32 %v424, 0.38439733
        %v433 = vmul.f32 %v425, 0.38439733
        %v434 = vmul.f32 %v426, 0.38439733
        %v435 = vmul.f32 %v427, 0.38439733
        %v436 = vmul.f32 %v428, 0.38439733
        %v437 = vmul.f32 %v429, 0.38439733
        %v438 = vmul.f32 %v430, 0.38439733
        %v439 = vmul.f32 %v431, 0.38439733
        %vm448 = vcmask 1046528
        %v449 = vrot.slane %v424, 1
        %v450 = vrot.slane %v425, 1
        %v451 = vsel %vm448, %v449, %v450
        %v452 = vrot.slane %v426, 1
        %v453 = vsel %vm448, %v450, %v452
        %v454 = vrot.slane %v427, 1
        %v455 = vsel %vm448, %v452, %v454
        %v456 = vrot.slane %v428, 1
        %v457 = vrot.slane %v429, 1
        %v458 = vsel %vm448, %v456, %v457
        %v459 = vrot.slane %v430, 1
        %v460 = vsel %vm448, %v457, %v459
        %v461 = vrot.slane %v431, 1
        %v462 = vsel %vm448, %v459, %v461
        %v473 = vsel %vm448, %v454, %v449
        %v474 = vsel %vm448, %v461, %v456
        %v475 = vrot.slane %v427, 7
        %v476 = vrot.slane %v431, 7
        %vm479 = vcmask 1040384
        %v480 = vrot.slane %v424, 7
        %v481 = vrot.slane %v425, 7
        %v482 = vsel %vm479, %v480, %v481
        %v483 = vrot.slane %v426, 7
        %v484 = vsel %vm479, %v481, %v483
        %v485 = vsel %vm479, %v483, %v475
        %v486 = vrot.slane %v428, 7
        %v487 = vrot.slane %v429, 7
        %v488 = vsel %vm479, %v486, %v487
        %v489 = vrot.slane %v430, 7
        %v490 = vsel %vm479, %v487, %v489
        %v491 = vsel %vm479, %v489, %v476
        %v500 = vsel %vm479, %v475, %v480
        %v501 = vsel %vm479, %v476, %v486
        %v502 = vadd.f32 %v451, %v500
        %v503 = vadd.f32 %v453, %v482
        %v504 = vadd.f32 %v455, %v484
        %v505 = vadd.f32 %v473, %v485
        %v506 = vadd.f32 %v458, %v501
        %v507 = vadd.f32 %v460, %v488
        %v508 = vadd.f32 %v462, %v490
        %v509 = vadd.f32 %v474, %v491
        %v510 = vmul.f32 %v502, 0.30780134
        %v511 = vmul.f32 %v503, 0.30780134
        %v512 = vmul.f32 %v504, 0.30780134
        %v513 = vmul.f32 %v505, 0.30780134
        %v514 = vmul.f32 %v506, 0.30780134
        %v515 = vmul.f32 %v507, 0.30780134
        %v516 = vmul.f32 %v508, 0.30780134
        %v517 = vmul.f32 %v509, 0.30780134
        %v518 = vadd.f32 %v432, %v510
        %v519 = vadd.f32 %v433, %v511
        %v520 = vadd.f32 %v434, %v512
        %v521 = vadd.f32 %v435, %v513
        %v522 = vadd.f32 %v436, %v514
        %v523 = vadd.f32 %v437, %v515
        %v524 = vadd.f32 %v438, %v516
        %v525 = vadd.f32 %v439, %v517
        %v526 = vlaneseq
        %v527 = vshrl.u32 %v526, 7
        %v528 = vadd.s32 %v527, 8
        %v529 = vadd.s32 %v527, 16
        %v530 = vadd.s32 %v527, 24
        %vm531 = vcmp.eq.s32.totalorder %v527, 0
        %vm532 = vcmp.eq.s32.totalorder %v528, 0
        %vm533 = vcmp.eq.s32.totalorder %v529, 0
        %vm534 = vcmp.eq.s32.totalorder %v530, 0
        %v535 = vmul.f32 %v424, 0.30780134
        %v536 = vmul.f32 %v428, 0.30780134
        %v539 = vrot.slane %v432, 7
        %v540 = vrot.slane %v436, 7
        %v543 = vadd.f32 %v535, %v539
        %v544 = vadd.f32 %v536, %v540
        %v545 = vadd.f32 %v543, %v535
        %v546 = vadd.f32 %v544, %v536
        %v547 = vperm.slane %v545, 1
        %v548 = vperm.slane %v546, 1
        %v549 = vsel %vm531, %v547, %v518
        %v550 = vsel %vm532, %v547, %v519
        %v551 = vsel %vm533, %v547, %v520
        %v552 = vsel %vm534, %v547, %v521
        %v553 = vsel %vm531, %v548, %v522
        %v554 = vsel %vm532, %v548, %v523
        %v555 = vsel %vm533, %v548, %v524
        %v556 = vsel %vm534, %v548, %v525
        %vm557 = vcmp.eq.s32.totalorder %v527, 31
        %vm558 = vcmp.eq.s32.totalorder %v528, 31
        %vm559 = vcmp.eq.s32.totalorder %v529, 31
        %vm560 = vcmp.eq.s32.totalorder %v530, 31
        %v561 = vmul.f32 %v427, 0.30780134
        %v562 = vmul.f32 %v431, 0.30780134
        %v565 = vrot.slane %v435, 1
        %v566 = vrot.slane %v439, 1
        %v569 = vadd.f32 %v561, %v565
        %v570 = vadd.f32 %v562, %v566
        %v571 = vadd.f32 %v569, %v561
        %v572 = vadd.f32 %v570, %v562
        %v573 = vperm.slane %v571, 6
        %v574 = vperm.slane %v572, 6
        %v575 = vsel %vm557, %v573, %v549
        %v576 = vsel %vm558, %v573, %v550
        %v577 = vsel %vm559, %v573, %v551
        %v578 = vsel %vm560, %v573, %v552
        %v579 = vsel %vm557, %v574, %v553
        %v580 = vsel %vm558, %v574, %v554
        %v581 = vsel %vm559, %v574, %v555
        %v582 = vsel %vm560, %v574, %v556
        %583 = vst [vmem:[%s137] sm:$0xff] %v575
        %584 = vst [vmem:[%s137 + $0x8] sm:$0xff] %v576
        %585 = vst [vmem:[%s137 + $0x10] sm:$0xff] %v577
        %586 = vst [vmem:[%s137 + $0x18] sm:$0xff] %v578
        %587 = vst [vmem:[%s137 + $0x20] sm:$0xff] %v579
        %588 = vst [vmem:[%s137 + $0x28] sm:$0xff] %v580
        %589 = vst [vmem:[%s137 + $0x30] sm:$0xff] %v581
        %590 = vst [vmem:[%s137 + $0x38] sm:$0xff] %v582
        %s591 = sand.u32 %s52, 1
        %s592 = scalar_lea.sflag [#allocation4], %s591
        %s593 = sand.u32 %s52, 1
        %s594 = smul.addr %s593, 64
        %s595 = scalar_lea.vmem [#allocation5], %s594
        // Predicated region
        $region29: #{tpu_custom_call.1} parent=23 // pred_check
          %p596 = pneg %p62
        $region30: #{tpu_custom_call.1} parent=23 // pred_check_branch
          %598 = sbr.rel (%p596) target = $region32
        $region31: #{tpu_custom_call.1} parent=23 // pred_region
          %s599 = smul.u32 2, %s18
          %601 = vsyncadd %s592, 0
          %s602 = smul.addr %s599, 4
          %s603 = smul.addr %s602, 8
          %s604 = scalar_lea.hbm %s1, %s603
          %s605 = sshll.u32 %s595, 4
          %s606 = int_to_ptr.vmem [resolvable:$true] %s605
          %s607 = sshll.u32 %s604, 4
          %s608 = int_to_ptr.hbm [resolvable:$true] %s607
          %613 = dma.vmem_to_hbm [thread:$0]  %s606, 1024, %s608, %s592, 128, 128, 8
        $region32: #{tpu_custom_call.1} parent=23 // pred_fallthru
          _
      $region24: #{tpu_custom_call.1} parent=5 // pred_fallthru
        _
      %p614 = scmp.le.s32.totalorder 2, %s13
      // Predicated region
      $region33: #{tpu_custom_call.1} parent=5 // pred_check
        %p615 = pneg %p614
      $region34: #{tpu_custom_call.1} parent=5 // pred_check_branch
        %617 = sbr.rel (%p615) target = $region36
      $region35: #{tpu_custom_call.1} parent=5 // pred_region
        %s618 = ssub.s32 %s13, 2
        // Predicated region
        $region37: #{tpu_custom_call.1} parent=35 // pred_check
          %p619 = pneg %p68
        $region38: #{tpu_custom_call.1} parent=35 // pred_check_branch
          %621 = sbr.rel (%p619) target = $region40
        $region39: #{tpu_custom_call.1} parent=35 // pred_region
          %s622 = sand.u32 %s53, 1
          %s623 = scalar_lea.sflag [#allocation4], %s622
          %s624 = sand.u32 %s53, 1
          %s625 = smul.addr %s624, 64
          %s626 = scalar_lea.vmem [#allocation5], %s625
          %628 = dma.done %s623, 1024
        $region40: #{tpu_custom_call.1} parent=35 // pred_fallthru
          _
      $region36: #{tpu_custom_call.1} parent=5 // pred_fallthru
        _
    $region6: #{tpu_custom_call.1} parent=1 // loop_footer
      %s17 = sadd.s32 1, %s13
    $region7: #{tpu_custom_call.1} parent=1 // loop_footer_branch
      %12 = sbr.rel target = $region3
    $region8: #{tpu_custom_call.1} parent=1 // loop_exit
      _
    %629 = vsyncpa [#allocation3], 1
    %s630 = scalar_lea.sflag [#allocation3], 1
    %631 = vsyncpa %s630, 1
    %632 = vsyncpa [#allocation4], 1
    %s633 = scalar_lea.sflag [#allocation4], 1
    %634 = vsyncpa %s633, 1

</llo_original>
